<compile_context>
chip_gen: v7x
topology: tpu7x:2x2x1
jax: 0.10.0
libtpu: 0.0.40
codegen_flags: <defaults>
</compile_context>

<pallas_src>
import functools
import math

import jax
import jax.numpy as jnp
from jax.experimental import pallas as pl
from jax.experimental.pallas import tpu as pltpu

BN_EPS = 1e-5
LEAKY_SLOPE = 0.2
LANE = 128          # Cout padded to this for the MXU RHS / f32 accumulator
STATS_ROWS = 8      # sublane-aligned stats block; only rows 0 (sum) and 1 (M2) are written


def _round_up(x, m):
    return (x + m - 1) // m * m


def _vmem_limit_bytes():
    """Per-chip VMEM request (v5e/v6e: 128 MiB physical, v7x: 64 MiB)."""
    cap = 64 * 1024 * 1024  # conservative fallback = v7x physical VMEM per TC
    try:
        info = pltpu.get_tpu_info()
        cap = int(getattr(info, "vmem_capacity_bytes", cap))
    except Exception:
        pass
    return max(32 * 1024 * 1024, min(cap * 3 // 4, 100 * 1024 * 1024))


def _pick_tile_rows(M, K, Cp, Cout, in_itemsize, vmem_limit):
    """Row-tile size sized from the VMEM budget (double-buffered blocks)."""
    resident = K * Cp * in_itemsize + 4 * Cp * 4          # weights + scale/shift
    per_row = (2 * K * in_itemsize                         # double-buffered cols tile
               + Cp * 4                                    # f32 conv tile in VMEM
               + 2 * Cout * 4                              # double-buffered out tile
               + 2 * Cout * in_itemsize)                   # double-buffered stored-y tile
    budget = max(int(vmem_limit * 0.7) - resident, per_row * 8)
    tm = min(budget // per_row, 8192)
    # keep several tiles so the "parallel" axis can feed both v7x TensorCores
    if M > 8 * 1024:
        tm = min(tm, max(_round_up(pl.cdiv(M, 8), 256), 1024))
    tm = min(tm, _round_up(M, 8))
    return max(8, _round_up(tm, 8))


# ---------------------------------------------------------------------------
# Kernel bodies
# ---------------------------------------------------------------------------
def _conv_tile(cols_ref, w_ref):
    return jnp.dot(cols_ref[...], w_ref[...], preferred_element_type=jnp.float32)


def _tile_stats(y, i, m_total, tile_rows):
    """Per-tile masked sum and per-tile-mean-centered sum of squares."""
    rows = jax.lax.broadcasted_iota(jnp.int32, (tile_rows, 1), 0)
    remaining = m_total - i * tile_rows
    valid = rows < remaining
    count = jnp.minimum(remaining, tile_rows).astype(jnp.float32)
    ym = jnp.where(valid, y, 0.0)
    s1 = jnp.sum(ym, axis=0, keepdims=True)                # (1, Cp)
    mu = s1 / count
    d = jnp.where(valid, y - mu, 0.0)
    m2 = jnp.sum(d * d, axis=0, keepdims=True)             # (1, Cp)
    return s1, m2


def _conv_stats_kernel(cols_ref, w_ref, stats_ref, *, m_total, tile_rows):
    i = pl.program_id(0)
    y = _conv_tile(cols_ref, w_ref)
    s1, m2 = _tile_stats(y, i, m_total, tile_rows)
    stats_ref[0:1, :] = s1
    stats_ref[1:2, :] = m2


def _conv_stats_store_kernel(cols_ref, w_ref, y_ref, stats_ref, *, m_total, tile_rows):
    i = pl.program_id(0)
    y = _conv_tile(cols_ref, w_ref)
    s1, m2 = _tile_stats(y, i, m_total, tile_rows)
    stats_ref[0:1, :] = s1
    stats_ref[1:2, :] = m2
    y_ref[...] = y[:, : y_ref.shape[1]].astype(y_ref.dtype)


def _apply_recompute_kernel(cols_ref, w_ref, scale_ref, shift_ref, out_ref):
    y = _conv_tile(cols_ref, w_ref)
    z = y * scale_ref[...] + shift_ref[...]
    z = jnp.where(z >= 0, z, LEAKY_SLOPE * z)
    out_ref[...] = z[:, : out_ref.shape[1]].astype(out_ref.dtype)


def _apply_stored_kernel(y_ref, scale_ref, shift_ref, out_ref):
    z = y_ref[...].astype(jnp.float32) * scale_ref[...] + shift_ref[...]
    out_ref[...] = jnp.where(z >= 0, z, LEAKY_SLOPE * z).astype(out_ref.dtype)


# ---------------------------------------------------------------------------
# Wrapper
# ---------------------------------------------------------------------------
@functools.partial(jax.jit,
                   static_argnames=("compute_dtype", "tile_rows", "store_y", "out_layout"))
def blocks_forward(x_nchw, w, b, gamma, beta, *, compute_dtype=jnp.bfloat16,
                   tile_rows=None, store_y=None, out_layout="NCHW"):
    """Forward of Blocks: Conv2d(3x3, s=2, p=1) -> BatchNorm2d (train) -> LeakyReLU(0.2)."""
    if out_layout not in ("NCHW", "NHWC"):
        raise ValueError("out_layout must be NCHW or NHWC")
    del b  # conv bias cancels exactly under training-mode BatchNorm

    N, Cin, H, W = x_nchw.shape
    Cout = w.shape[0]
    Ho = (H + 2 - 3) // 2 + 1
    Wo = (W + 2 - 3) // 2 + 1
    M = N * Ho * Wo
    K = 9 * Cin
    Cp = _round_up(Cout, LANE)
    in_itemsize = jnp.dtype(compute_dtype).itemsize
    out_dtype = x_nchw.dtype

    # ---- im2col directly in compute dtype (single low-precision copy) --------
    x = jnp.transpose(x_nchw, (0, 2, 3, 1)).astype(compute_dtype)       # NHWC
    xp = jnp.pad(x, ((0, 0), (1, 1), (1, 1), (0, 0)))
    patches = []
    for kh in range(3):
        for kw in range(3):
            patches.append(jax.lax.slice(
                xp, (0, kh, kw, 0),
                (N, kh + 2 * (Ho - 1) + 1, kw + 2 * (Wo - 1) + 1, Cin),
                strides=(1, 2, 2, 1)))
    cols = jnp.stack(patches, axis=3).reshape(M, K)

    vmem_limit = _vmem_limit_bytes()
    if tile_rows is None:
        tm = _pick_tile_rows(M, K, Cp, Cout, in_itemsize, vmem_limit)
    else:
        tm = max(8, _round_up(min(tile_rows, _round_up(M, 8)), 8))
    num_tiles = pl.cdiv(M, tm)
    M_pad = num_tiles * tm
    if M_pad > M:
        cols = jnp.pad(cols, ((0, M_pad - M), (0, 0)))

    # weights -> (K, Cp); BN params -> (Cp,)
    w2d = jnp.transpose(w, (2, 3, 1, 0)).reshape(K, Cout)
    w2d = jnp.pad(w2d, ((0, 0), (0, Cp - Cout))).astype(compute_dtype)
    gamma_p = jnp.pad(gamma.astype(jnp.float32), (0, Cp - Cout))
    beta_p = jnp.pad(beta.astype(jnp.float32), (0, Cp - Cout))

    if store_y is None:
        # store y (2 * Cout bytes/row round trip) vs re-read cols (K bytes/row)
        store_y = (2 * Cout) < K

    cparams = pltpu.CompilerParams(
        dimension_semantics=("parallel",),
        vmem_limit_bytes=vmem_limit,
    )
    flops_mm = 2 * M_pad * K * Cp
    cols_bytes = M_pad * K * in_itemsize
    w_bytes = K * Cp * in_itemsize
    stats_bytes = num_tiles * STATS_ROWS * Cp * 4

    cols_spec = pl.BlockSpec((tm, K), lambda i: (i, 0))
    w_spec = pl.BlockSpec((K, Cp), lambda i: (0, 0))                 # VMEM-resident
    stats_spec = pl.BlockSpec((None, STATS_ROWS, Cp), lambda i: (i, 0, 0))
    stats_shape = jax.ShapeDtypeStruct((num_tiles, STATS_ROWS, Cp), jnp.float32)

    # ------------------------------ pass 1 ------------------------------------
    if store_y:
        kern = functools.partial(_conv_stats_store_kernel, m_total=M, tile_rows=tm)
        y_store, stats = pl.pallas_call(
            kern,
            out_shape=(jax.ShapeDtypeStruct((M_pad, Cout), compute_dtype), stats_shape),
            grid=(num_tiles,),
            in_specs=[cols_spec, w_spec],
            out_specs=(pl.BlockSpec((tm, Cout), lambda i: (i, 0)), stats_spec),
            compiler_params=cparams,
            cost_estimate=pl.CostEstimate(
                flops=flops_mm + 6 * M_pad * Cp,
                transcendentals=0,
                bytes_accessed=cols_bytes + w_bytes + stats_bytes
                + M_pad * Cout * in_itemsize),
        )(cols, w2d)
    else:
        kern = functools.partial(_conv_stats_kernel, m_total=M, tile_rows=tm)
        stats = pl.pallas_call(
            kern,
            out_shape=stats_shape,
            grid=(num_tiles,),
            in_specs=[cols_spec, w_spec],
            out_specs=stats_spec,
            compiler_params=cparams,
            cost_estimate=pl.CostEstimate(
                flops=flops_mm + 6 * M_pad * Cp,
                transcendentals=0,
                bytes_accessed=cols_bytes + w_bytes + stats_bytes),
        )(cols, w2d)
        y_store = None

    # ---- tiny f32 finalize: exact parallel variance combine, fold BN ---------
    s1 = stats[:, 0, :]                                    # (T, Cp) per-tile sums
    m2 = stats[:, 1, :]                                    # (T, Cp) per-tile centered SSQs
    counts = jnp.minimum(tm, M - jnp.arange(num_tiles) * tm).astype(jnp.float32)[:, None]
    mean = jnp.sum(s1, axis=0) / M
    mu_t = s1 / counts
    m2_tot = jnp.sum(m2, axis=0) + jnp.sum(counts * jnp.square(mu_t - mean[None, :]), axis=0)
    var = m2_tot / M                                       # biased variance (training BN)
    scale = gamma_p * jax.lax.rsqrt(var + BN_EPS)
    shift = beta_p - mean * scale

    # ------------------------------ pass 2 ------------------------------------
    out_spec = pl.BlockSpec((tm, Cout), lambda i: (i, 0))
    out_sds = jax.ShapeDtypeStruct((M_pad, Cout), out_dtype)
    if store_y:
        scale_c = scale[:Cout].reshape(1, Cout)
        shift_c = shift[:Cout].reshape(1, Cout)
        out2d = pl.pallas_call(
            _apply_stored_kernel,
            out_shape=out_sds,
            grid=(num_tiles,),
            in_specs=[pl.BlockSpec((tm, Cout), lambda i: (i, 0)),
                      pl.BlockSpec((1, Cout), lambda i: (0, 0)),
                      pl.BlockSpec((1, Cout), lambda i: (0, 0))],
            out_specs=out_spec,
            compiler_params=cparams,
            cost_estimate=pl.CostEstimate(
                flops=4 * M_pad * Cout,
                transcendentals=0,
                bytes_accessed=M_pad * Cout * (in_itemsize + jnp.dtype(out_dtype).itemsize)),
        )(y_store, scale_c, shift_c)
    else:
        out2d = pl.pallas_call(
            _apply_recompute_kernel,
            out_shape=out_sds,
            grid=(num_tiles,),
            in_specs=[cols_spec, w_spec,
                      pl.BlockSpec((1, Cp), lambda i: (0, 0)),
                      pl.BlockSpec((1, Cp), lambda i: (0, 0))],
            out_specs=out_spec,
            compiler_params=cparams,
            cost_estimate=pl.CostEstimate(
                flops=flops_mm + 4 * M_pad * Cp,
                transcendentals=0,
                bytes_accessed=cols_bytes + w_bytes
                + M_pad * Cout * jnp.dtype(out_dtype).itemsize),
        )(cols, w2d, scale.reshape(1, Cp), shift.reshape(1, Cp))

    # ------------------------------ epilogue -----------------------------------
    out = out2d[:M].reshape(N, Ho, Wo, Cout)
    if out_layout == "NHWC":
        return out
    return jnp.transpose(out, (0, 3, 1, 2))                # (N, Cout, Ho, Wo)


# ---------------------------------------------------------------------------
# Pure-JAX reference (PyTorch training-mode semantics) and self-test
# ---------------------------------------------------------------------------
def _reference(x_nchw, w, b, gamma, beta):
    y = jax.lax.conv_general_dilated(
        x_nchw.astype(jnp.float32), w.astype(jnp.float32),
        window_strides=(2, 2), padding=((1, 1), (1, 1)),
        dimension_numbers=("NCHW", "OIHW", "NCHW"),
    ) + b[None, :, None, None]
    mean = y.mean(axis=(0, 2, 3), keepdims=True)
    var = ((y - mean) ** 2).mean(axis=(0, 2, 3), keepdims=True)
    y = (y - mean) / jnp.sqrt(var + BN_EPS)
    y = y * gamma[None, :, None, None] + beta[None, :, None, None]
    return jnp.where(y >= 0, y, LEAKY_SLOPE * y)


if __name__ == "__main__":
    def make_params(key, cin, cout):
        kx, kw, kb, kg, kbe = jax.random.split(key, 5)
        bound = 1.0 / math.sqrt(cin * 9)
        w = jax.random.uniform(kw, (cout, cin, 3, 3), jnp.float32, -bound, bound)
        b = jax.random.uniform(kb, (cout,), jnp.float32, -bound, bound)
        gamma = jax.random.uniform(kg, (cout,), jnp.float32, 0.5, 1.5)
        beta = 0.1 * jax.random.normal(kbe, (cout,), jnp.float32)
        return kx, w, b, gamma, beta

    key = jax.random.PRNGKey(0)
    k1, k2 = jax.random.split(key)

    # Case 1: N=2, Cin=4, H=W=16, Cout=8
    kx, w, b, gamma, beta = make_params(k1, 4, 8)
    x = jax.random.normal(kx, (2, 4, 16, 16), jnp.float32)
    ref = _reference(x, w, b, gamma, beta)

    out_rc = jax.block_until_ready(blocks_forward(
        x, w, b, gamma, beta, compute_dtype=jnp.float32, store_y=False))
    assert out_rc.shape == (2, 8, 8, 8), out_rc.shape
    err = float(jnp.max(jnp.abs(out_rc - ref)))
    assert err < 2e-3, f"f32 recompute path error {err}"

    out_st = jax.block_until_ready(blocks_forward(
        x, w, b, gamma, beta, compute_dtype=jnp.float32, store_y=True))
    err = float(jnp.max(jnp.abs(out_st - ref)))
    assert err < 2e-3, f"f32 stored-y path error {err}"

    out_bf = jax.block_until_ready(blocks_forward(x, w, b, gamma, beta))
    err = float(jnp.max(jnp.abs(out_bf - ref)))
    assert err < 7e-2, f"bf16 path error {err}"

    # Case 2: odd spatial size -> exercises M padding + masked statistics; NHWC out
    kx2, w2, b2, gamma2, beta2 = make_params(k2, 3, 16)
    x2 = jax.random.normal(kx2, (1, 3, 13, 13), jnp.float32)
    ref2 = _reference(x2, w2, b2, gamma2, beta2)
    out2 = jax.block_until_ready(blocks_forward(
        x2, w2, b2, gamma2, beta2, compute_dtype=jnp.float32,
        tile_rows=32, store_y=True, out_layout="NHWC"))
    assert out2.shape == (1, 7, 7, 16), out2.shape
    err2 = float(jnp.max(jnp.abs(jnp.transpose(out2, (0, 3, 1, 2)) - ref2)))
    assert err2 < 2e-3, f"padded-shape path error {err2}"

    print("KERNEL_OK")
</pallas_src>

<mosaic_0001>
module attributes {stable_mosaic.version = 11 : i64} {
  func.func @_apply_recompute_kernel(%arg0: i32, %arg1: memref<128x36xf32, #tpu.memory_space<vmem>>, %arg2: memref<36x128xf32, #tpu.memory_space<vmem>>, %arg3: memref<1x128xf32, #tpu.memory_space<vmem>>, %arg4: memref<1x128xf32, #tpu.memory_space<vmem>>, %arg5: memref<128x8xf32, #tpu.memory_space<vmem>>) attributes {dimension_semantics = [#tpu.dimension_semantics<parallel>], iteration_bounds = array<i64: 1>, scalar_prefetch = 0 : i64, scratch_operands = 0 : i64, tpu.core_type = #tpu.core_type<tc>, window_params = [{transform_indices = @transform_0, window_bounds = array<i64: 128, 36>}, {pipeline_mode = #tpu.pipeline_mode<synchronous>, transform_indices = @transform_1, window_bounds = array<i64: 36, 128>}, {pipeline_mode = #tpu.pipeline_mode<synchronous>, transform_indices = @transform_2, window_bounds = array<i64: 1, 128>}, {pipeline_mode = #tpu.pipeline_mode<synchronous>, transform_indices = @transform_3, window_bounds = array<i64: 1, 128>}, {transform_indices = @transform_4, window_bounds = array<i64: 128, 8>}]} {
    %c0 = arith.constant 0 : index
    %c0_0 = arith.constant 0 : index
    %0 = vector.load %arg1[%c0, %c0_0] : memref<128x36xf32, #tpu.memory_space<vmem>>, vector<128x36xf32>
    %c0_1 = arith.constant 0 : index
    %c0_2 = arith.constant 0 : index
    %1 = vector.load %arg2[%c0_1, %c0_2] : memref<36x128xf32, #tpu.memory_space<vmem>>, vector<36x128xf32>
    %cst = arith.constant dense<0.000000e+00> : vector<128x128xf32>
    %2 = tpu.matmul %0, %1, %cst {dimension_numbers = #tpu.dot_dimension_numbers<[1], [0], [0], [1], [0, 0, 1, 1], [], []>} : vector<128x36xf32>, vector<36x128xf32>, vector<128x128xf32> -> vector<128x128xf32>
    %c0_3 = arith.constant 0 : index
    %c0_4 = arith.constant 0 : index
    %3 = vector.load %arg3[%c0_3, %c0_4] : memref<1x128xf32, #tpu.memory_space<vmem>>, vector<1x128xf32>
    %4 = vector.broadcast %3 : vector<1x128xf32> to vector<128x128xf32>
    %5 = arith.mulf %2, %4 : vector<128x128xf32>
    %c0_5 = arith.constant 0 : index
    %c0_6 = arith.constant 0 : index
    %6 = vector.load %arg4[%c0_5, %c0_6] : memref<1x128xf32, #tpu.memory_space<vmem>>, vector<1x128xf32>
    %7 = vector.broadcast %6 : vector<1x128xf32> to vector<128x128xf32>
    %8 = arith.addf %5, %7 : vector<128x128xf32>
    %cst_7 = arith.constant 0.000000e+00 : f32
    %9 = vector.broadcast %cst_7 : f32 to vector<128x128xf32>
    %10 = arith.cmpf oge, %8, %9 : vector<128x128xf32>
    %cst_8 = arith.constant 2.000000e-01 : f32
    %11 = vector.broadcast %cst_8 : f32 to vector<128x128xf32>
    %12 = arith.mulf %11, %8 : vector<128x128xf32>
    %13 = arith.select %10, %8, %12 : vector<128x128xi1>, vector<128x128xf32>
    %14 = vector.extract_strided_slice %13 {offsets = [0, 0], sizes = [128, 8], strides = [1, 1]} : vector<128x128xf32> to vector<128x8xf32>
    %c0_9 = arith.constant 0 : index
    %c0_10 = arith.constant 0 : index
    %15 = vector.load %arg5[%c0_9, %c0_10] : memref<128x8xf32, #tpu.memory_space<vmem>>, vector<128x8xf32>
    tpu.vector_store %arg5[%c0_9, %c0_10], %14 {strides = array<i32>} : memref<128x8xf32, #tpu.memory_space<vmem>>, vector<128x8xf32>,
    return
  }
  func.func @transform_0(%arg0: i32) -> (i32, i32) {
    %c0_i32 = arith.constant 0 : i32
    %c0_i32_0 = arith.constant 0 : i32
    return %arg0, %c0_i32 : i32, i32
  }
  func.func @transform_1(%arg0: i32) -> (i32, i32) {
    %c0_i32 = arith.constant 0 : i32
    %c0_i32_0 = arith.constant 0 : i32
    %c0_i32_1 = arith.constant 0 : i32
    return %c0_i32, %c0_i32_0 : i32, i32
  }
  func.func @transform_2(%arg0: i32) -> (i32, i32) {
    %c0_i32 = arith.constant 0 : i32
    %c0_i32_0 = arith.constant 0 : i32
    %c0_i32_1 = arith.constant 0 : i32
    return %c0_i32, %c0_i32_0 : i32, i32
  }
  func.func @transform_3(%arg0: i32) -> (i32, i32) {
    %c0_i32 = arith.constant 0 : i32
    %c0_i32_0 = arith.constant 0 : i32
    %c0_i32_1 = arith.constant 0 : i32
    return %c0_i32, %c0_i32_0 : i32, i32
  }
  func.func @transform_4(%arg0: i32) -> (i32, i32) {
    %c0_i32 = arith.constant 0 : i32
    %c0_i32_0 = arith.constant 0 : i32
    return %arg0, %c0_i32 : i32, i32
  }
}

module attributes {stable_mosaic.version = 11 : i64} {
  func.func @_conv_stats_kernel(%arg0: i32, %arg1: memref<128x36xf32, #tpu.memory_space<vmem>>, %arg2: memref<36x128xf32, #tpu.memory_space<vmem>>, %arg3: memref<1x8x128xf32, #tpu.memory_space<vmem>>) attributes {dimension_semantics = [#tpu.dimension_semantics<parallel>], iteration_bounds = array<i64: 1>, scalar_prefetch = 0 : i64, scratch_operands = 0 : i64, tpu.core_type = #tpu.core_type<tc>, window_params = [{transform_indices = @transform_0, window_bounds = array<i64: 128, 36>}, {pipeline_mode = #tpu.pipeline_mode<synchronous>, transform_indices = @transform_1, window_bounds = array<i64: 36, 128>}, {transform_indices = @transform_2, window_bounds = array<i64: 1, 8, 128>}]} {
    %c0 = arith.constant 0 : index
    %c0_0 = arith.constant 0 : index
    %0 = vector.load %arg1[%c0, %c0_0] : memref<128x36xf32, #tpu.memory_space<vmem>>, vector<128x36xf32>
    %c0_1 = arith.constant 0 : index
    %c0_2 = arith.constant 0 : index
    %1 = vector.load %arg2[%c0_1, %c0_2] : memref<36x128xf32, #tpu.memory_space<vmem>>, vector<36x128xf32>
    %cst = arith.constant dense<0.000000e+00> : vector<128x128xf32>
    %2 = tpu.matmul %0, %1, %cst {dimension_numbers = #tpu.dot_dimension_numbers<[1], [0], [0], [1], [0, 0, 1, 1], [], []>} : vector<128x36xf32>, vector<36x128xf32>, vector<128x128xf32> -> vector<128x128xf32>
    %3 = tpu.iota {dimensions = array<i32: 0>} : vector<128x1xi32>
    %c128_i32 = arith.constant 128 : i32
    %4 = arith.muli %arg0, %c128_i32 : i32
    %c128_i32_3 = arith.constant 128 : i32
    %5 = arith.subi %c128_i32_3, %4 : i32
    %6 = vector.broadcast %5 : i32 to vector<128x1xi32>
    %7 = arith.cmpi slt, %3, %6 : vector<128x1xi32>
    %c128_i32_4 = arith.constant 128 : i32
    %8 = arith.minsi %5, %c128_i32_4 : i32
    %9 = arith.sitofp %8 : i32 to f32
    %cst_5 = arith.constant 0.000000e+00 : f32
    %10 = vector.shape_cast %7 : vector<128x1xi1> to vector<128x1xi1>
    %11 = vector.broadcast %10 : vector<128x1xi1> to vector<128x128xi1>
    %12 = vector.broadcast %cst_5 : f32 to vector<128x128xf32>
    %13 = arith.select %11, %2, %12 : vector<128x128xi1>, vector<128x128xf32>
    %cst_6 = arith.constant dense<0.000000e+00> : vector<128xf32>
    %14 = vector.multi_reduction <add>, %13, %cst_6 [0] : vector<128x128xf32> to vector<128xf32>
    %15 = vector.shape_cast %14 : vector<128xf32> to vector<1x128xf32>
    %16 = vector.broadcast %9 : f32 to vector<1x128xf32>
    %17 = arith.divf %15, %16 : vector<1x128xf32>
    %18 = vector.broadcast %17 : vector<1x128xf32> to vector<128x128xf32>
    %19 = arith.subf %2, %18 : vector<128x128xf32>
    %cst_7 = arith.constant 0.000000e+00 : f32
    %20 = vector.shape_cast %7 : vector<128x1xi1> to vector<128x1xi1>
    %21 = vector.broadcast %20 : vector<128x1xi1> to vector<128x128xi1>
    %22 = vector.broadcast %cst_7 : f32 to vector<128x128xf32>
    %23 = arith.select %21, %19, %22 : vector<128x128xi1>, vector<128x128xf32>
    %24 = arith.mulf %23, %23 : vector<128x128xf32>
    %cst_8 = arith.constant dense<0.000000e+00> : vector<128xf32>
    %25 = vector.multi_reduction <add>, %24, %cst_8 [0] : vector<128x128xf32> to vector<128xf32>
    %26 = vector.shape_cast %25 : vector<128xf32> to vector<1x128xf32>
    %c0_9 = arith.constant 0 : index
    %c0_10 = arith.constant 0 : index
    %c0_11 = arith.constant 0 : index
    %27 = vector.load %arg3[%c0_9, %c0_10, %c0_11] : memref<1x8x128xf32, #tpu.memory_space<vmem>>, vector<1x1x128xf32>
    %28 = vector.shape_cast %27 : vector<1x1x128xf32> to vector<1x128xf32>
    %29 = vector.shape_cast %15 : vector<1x128xf32> to vector<1x1x128xf32>
    tpu.vector_store %arg3[%c0_9, %c0_10, %c0_11], %29 {strides = array<i32>} : memref<1x8x128xf32, #tpu.memory_space<vmem>>, vector<1x1x128xf32>,
    %c0_12 = arith.constant 0 : index
    %c1 = arith.constant 1 : index
    %c0_13 = arith.constant 0 : index
    %30 = vector.load %arg3[%c0_12, %c1, %c0_13] : memref<1x8x128xf32, #tpu.memory_space<vmem>>, vector<1x1x128xf32>
    %31 = vector.shape_cast %30 : vector<1x1x128xf32> to vector<1x128xf32>
    %32 = vector.shape_cast %26 : vector<1x128xf32> to vector<1x1x128xf32>
    tpu.vector_store %arg3[%c0_12, %c1, %c0_13], %32 {strides = array<i32>} : memref<1x8x128xf32, #tpu.memory_space<vmem>>, vector<1x1x128xf32>,
    return
  }
  func.func @transform_0(%arg0: i32) -> (i32, i32) {
    %c0_i32 = arith.constant 0 : i32
    %c0_i32_0 = arith.constant 0 : i32
    return %arg0, %c0_i32 : i32, i32
  }
  func.func @transform_1(%arg0: i32) -> (i32, i32) {
    %c0_i32 = arith.constant 0 : i32
    %c0_i32_0 = arith.constant 0 : i32
    %c0_i32_1 = arith.constant 0 : i32
    return %c0_i32, %c0_i32_0 : i32, i32
  }
  func.func @transform_2(%arg0: i32) -> (i32, i32, i32) {
    %c0_i32 = arith.constant 0 : i32
    %c0_i32_0 = arith.constant 0 : i32
    %c0_i32_1 = arith.constant 0 : i32
    return %arg0, %c0_i32, %c0_i32_0 : i32, i32, i32
  }
}

</mosaic_0001>

<llo_original>
// kernel: blocks_forward.3
$region0: #{blocks_forward.3}
  #allocation0 [shape = 'u32[]', space=smem, size = 0x4, offset = 0x4, fixed_abs, tag = 'smem constant byte address 0x4 - core index']
  #allocation1 [shape = 'u32[144,128]{1,0:T(1,128)}', space=vmem, size = 0x12000, scoped, tag = 'internal scratch']
  %s0 = inlined_call_operand.vmem [shape: f32[128,36], index: 0, kind: input, shape index: {}]
  %s1 = inlined_call_operand.vmem [shape: f32[36,128], index: 1, kind: input, shape index: {}]
  %s2 = inlined_call_operand.vmem [shape: f32[1,128], index: 2, kind: input, shape index: {}]
  %s3 = inlined_call_operand.vmem [shape: f32[1,128], index: 3, kind: input, shape index: {}]
  %s4 = inlined_call_operand.vmem [shape: f32[128,8], index: 4, kind: output, shape index: {}]
  %s5 = sld [smem:[#allocation0]]
  $region26: #{blocks_forward.3} parent=0
    _
  %s7 = ssub.s32 1, %s5
  %s8 = scalar_select 0, %s7, %s5
  // Predicated region
  $region2: #{blocks_forward.3} parent=0 // pred_check
    _
  $region3: #{blocks_forward.3} parent=0 // pred_check_branch
    %10 = sbr.rel (0) target = $region5
  $region4: #{blocks_forward.3} parent=0 // pred_region
    _
  $region5: #{blocks_forward.3} parent=0 // pred_fallthru
    _
  // Predicated region
  $region6: #{blocks_forward.3} parent=0 // pred_check
    _
  $region7: #{blocks_forward.3} parent=0 // pred_check_branch
    %12 = sbr.rel (0) target = $region9
  $region8: #{blocks_forward.3} parent=0 // pred_region
    _
  $region9: #{blocks_forward.3} parent=0 // pred_fallthru
    _
  // Predicated region
  $region10: #{blocks_forward.3} parent=0 // pred_check
    _
  $region11: #{blocks_forward.3} parent=0 // pred_check_branch
    %14 = sbr.rel (0) target = $region13
  $region12: #{blocks_forward.3} parent=0 // pred_region
    _
  $region13: #{blocks_forward.3} parent=0 // pred_fallthru
    _
  // Predicated region
  $region14: #{blocks_forward.3} parent=0 // pred_check
    _
  $region15: #{blocks_forward.3} parent=0 // pred_check_branch
    %16 = sbr.rel (0) target = $region17
  $region16: #{blocks_forward.3} parent=0 // pred_region
    _
  $region17: #{blocks_forward.3} parent=0 // pred_fallthru
    _
  %v17 = vld [vmem:[%s0] sm:$0xff]
  %v18 = vld [vmem:[%s0 + $0x8] sm:$0xff]
  %v19 = vld [vmem:[%s0 + $0x10] sm:$0xff]
  %v20 = vld [vmem:[%s0 + $0x18] sm:$0xff]
  %v21 = vld [vmem:[%s0 + $0x20] sm:$0xff]
  %v22 = vld [vmem:[%s0 + $0x28] sm:$0xff]
  %v23 = vld [vmem:[%s0 + $0x30] sm:$0xff]
  %v24 = vld [vmem:[%s0 + $0x38] sm:$0xff]
  %v25 = vld [vmem:[%s0 + $0x40] sm:$0xff]
  %v26 = vld [vmem:[%s0 + $0x48] sm:$0xff]
  %v27 = vld [vmem:[%s0 + $0x50] sm:$0xff]
  %v28 = vld [vmem:[%s0 + $0x58] sm:$0xff]
  %v29 = vld [vmem:[%s0 + $0x60] sm:$0xff]
  %v30 = vld [vmem:[%s0 + $0x68] sm:$0xff]
  %v31 = vld [vmem:[%s0 + $0x70] sm:$0xff]
  %v32 = vld [vmem:[%s0 + $0x78] sm:$0xff]
  %v33 = vld [vmem:[%s1] sm:$0xff]
  %v34 = vld [vmem:[%s1 + $0x8] sm:$0xff]
  %v35 = vld [vmem:[%s1 + $0x10] sm:$0xff]
  %v36 = vld [vmem:[%s1 + $0x18] sm:$0xff]
  %v37 = vld [vmem:[%s1 + $0x20] sm:$0xf]
  %vm38 = vcmask 293888
  %v40 = vsel %vm38, %v17, 0
  %v43 = vsel %vm38, %v18, 0
  %v46 = vsel %vm38, %v19, 0
  %v49 = vsel %vm38, %v20, 0
  %v52 = vsel %vm38, %v21, 0
  %v55 = vsel %vm38, %v22, 0
  %v58 = vsel %vm38, %v23, 0
  %v61 = vsel %vm38, %v24, 0
  %v64 = vsel %vm38, %v25, 0
  %v67 = vsel %vm38, %v26, 0
  %v70 = vsel %vm38, %v27, 0
  %v73 = vsel %vm38, %v28, 0
  %v76 = vsel %vm38, %v29, 0
  %v79 = vsel %vm38, %v30, 0
  %v82 = vsel %vm38, %v31, 0
  %v85 = vsel %vm38, %v32, 0
  %vm87 = vcmask 1043456
  %v89 = vsel %vm87, %v37, 0
  %91 = vmatprep.subr.mxu0 0.0
  %92 = vmatpush1.msra.mxu0 %v33
  %93 = vmatprep.subr.mxu0 0.0
  %94 = vmatpush1.msra.mxu0 %v34
  %95 = vmatprep.subr.mxu0 0.0
  %96 = vmatpush1.msra.mxu0 %v35
  %97 = vmatprep.subr.mxu0 0.0
  %98 = vmatpush1.msra.mxu0 %v36
  %99 = vmatprep.subr.mxu0 0.0
  %100 = vmatpush1.msra.mxu0 %v89
  %101 = vmatprep.subr.mxu0 0.0
  %102 = vmatpush1.msra.mxu0 0.0
  %103 = vmatprep.subr.mxu0 0.0
  %104 = vmatpush1.msra.mxu0 0.0
  %105 = vmatprep.subr.mxu0 0.0
  %106 = vmatpush1.msra.mxu0 0.0
  %107 = vmatprep.subr.mxu0 0.0
  %108 = vmatpush1.msra.mxu0 0.0
  %109 = vmatprep.subr.mxu0 0.0
  %110 = vmatpush1.msra.mxu0 0.0
  %111 = vmatprep.subr.mxu0 0.0
  %112 = vmatpush1.msra.mxu0 0.0
  %113 = vmatprep.subr.mxu0 0.0
  %114 = vmatpush1.msra.mxu0 0.0
  %115 = vmatprep.subr.mxu0 0.0
  %116 = vmatpush1.msra.mxu0 0.0
  %117 = vmatprep.subr.mxu0 0.0
  %118 = vmatpush1.msra.mxu0 0.0
  %119 = vmatprep.subr.mxu0 0.0
  %120 = vmatpush1.msra.mxu0 0.0
  %121 = vmatprep.subr.mxu0 0.0
  %122 = vmatpush1.msra.mxu0 0.0
  %123 = vmatprep.subr.mxu0 0.0
  %124 = vmatpush1.msra.mxu0 0.0
  %125 = vmatprep.subr.mxu0 0.0
  %126 = vmatpush1.msra.mxu0 0.0
  %127 = vmatprep.subr.mxu0 0.0
  %128 = vmatpush1.msra.mxu0 0.0
  %129 = vmatprep.subr.mxu0 0.0
  %130 = vmatpush1.msra.mxu0 0.0
  %131 = vmatprep.subr.mxu0 0.0
  %132 = vmatpush1.msra.mxu0 0.0
  %133 = vmatprep.subr.mxu0 0.0
  %134 = vmatpush1.msra.mxu0 0.0
  %135 = vmatprep.subr.mxu0 0.0
  %136 = vmatpush1.msra.mxu0 0.0
  %137 = vmatprep.subr.mxu0 0.0
  %138 = vmatpush1.msra.mxu0 0.0
  %139 = vmatprep.subr.mxu0 0.0
  %140 = vmatpush1.msra.mxu0 0.0
  %141 = vmatprep.subr.mxu0 0.0
  %142 = vmatpush1.msra.mxu0 0.0
  %143 = vmatprep.subr.mxu0 0.0
  %144 = vmatpush1.msra.mxu0 0.0
  %145 = vmatprep.subr.mxu0 0.0
  %146 = vmatpush1.msra.mxu0 0.0
  %147 = vmatprep.subr.mxu0 0.0
  %148 = vmatpush1.msra.mxu0 0.0
  %149 = vmatprep.subr.mxu0 0.0
  %150 = vmatpush1.msra.mxu0 0.0
  %151 = vmatprep.subr.mxu0 0.0
  %152 = vmatpush1.msra.mxu0 0.0
  %153 = vmatprep.subr.mxu0 0.0
  %154 = vmatpush1.msra.mxu0 0.0
  %155 = vmatprep.mubr.f32.mxu0 0.0
  %156 = vmatmul.mubr.f32.gmra.mrb[0].mxu0 %v40
  %v157 = vpop.f32.mrb[0].mxu0
  %v158 = vadd.f32 0.0, %v157
  %v159 = vpop.f32.mrb[0].mxu0
  %160 = vmatprep.mubr.f32.mxu0 0.0
  %161 = vmatmul.mubr.f32.gmra.mrb[0].mxu0 %v43
  %v162 = vpop.f32.mrb[0].mxu0
  %v163 = vadd.f32 0.0, %v162
  %v164 = vpop.f32.mrb[0].mxu0
  %165 = vmatprep.mubr.f32.mxu0 0.0
  %166 = vmatmul.mubr.f32.gmra.mrb[0].mxu0 %v46
  %v167 = vpop.f32.mrb[0].mxu0
  %v168 = vadd.f32 0.0, %v167
  %v169 = vpop.f32.mrb[0].mxu0
  %170 = vmatprep.mubr.f32.mxu0 0.0
  %171 = vmatmul.mubr.f32.gmra.mrb[0].mxu0 %v49
  %v172 = vpop.f32.mrb[0].mxu0
  %v173 = vadd.f32 0.0, %v172
  %v174 = vpop.f32.mrb[0].mxu0
  %175 = vmatprep.mubr.f32.mxu0 0.0
  %176 = vmatmul.mubr.f32.gmra.mrb[0].mxu0 %v52
  %v177 = vpop.f32.mrb[0].mxu0
  %v178 = vadd.f32 0.0, %v177
  %v179 = vpop.f32.mrb[0].mxu0
  %180 = vmatprep.mubr.f32.mxu0 0.0
  %181 = vmatmul.mubr.f32.gmra.mrb[0].mxu0 %v55
  %v182 = vpop.f32.mrb[0].mxu0
  %v183 = vadd.f32 0.0, %v182
  %v184 = vpop.f32.mrb[0].mxu0
  %185 = vmatprep.mubr.f32.mxu0 0.0
  %186 = vmatmul.mubr.f32.gmra.mrb[0].mxu0 %v58
  %v187 = vpop.f32.mrb[0].mxu0
  %v188 = vadd.f32 0.0, %v187
  %v189 = vpop.f32.mrb[0].mxu0
  %190 = vmatprep.mubr.f32.mxu0 0.0
  %191 = vmatmul.mubr.f32.gmra.mrb[0].mxu0 %v61
  %v192 = vpop.f32.mrb[0].mxu0
  %v193 = vadd.f32 0.0, %v192
  %v194 = vpop.f32.mrb[0].mxu0
  %195 = vmatprep.mubr.f32.mxu0 0.0
  %196 = vmatmul.mubr.f32.gmra.mrb[0].mxu0 %v64
  %v197 = vpop.f32.mrb[0].mxu0
  %v198 = vadd.f32 0.0, %v197
  %v199 = vpop.f32.mrb[0].mxu0
  %200 = vmatprep.mubr.f32.mxu0 0.0
  %201 = vmatmul.mubr.f32.gmra.mrb[0].mxu0 %v67
  %v202 = vpop.f32.mrb[0].mxu0
  %v203 = vadd.f32 0.0, %v202
  %v204 = vpop.f32.mrb[0].mxu0
  %205 = vmatprep.mubr.f32.mxu0 0.0
  %206 = vmatmul.mubr.f32.gmra.mrb[0].mxu0 %v70
  %v207 = vpop.f32.mrb[0].mxu0
  %v208 = vadd.f32 0.0, %v207
  %v209 = vpop.f32.mrb[0].mxu0
  %210 = vmatprep.mubr.f32.mxu0 0.0
  %211 = vmatmul.mubr.f32.gmra.mrb[0].mxu0 %v73
  %v212 = vpop.f32.mrb[0].mxu0
  %v213 = vadd.f32 0.0, %v212
  %v214 = vpop.f32.mrb[0].mxu0
  %215 = vmatprep.mubr.f32.mxu0 0.0
  %216 = vmatmul.mubr.f32.gmra.mrb[0].mxu0 %v76
  %v217 = vpop.f32.mrb[0].mxu0
  %v218 = vadd.f32 0.0, %v217
  %v219 = vpop.f32.mrb[0].mxu0
  %220 = vmatprep.mubr.f32.mxu0 0.0
  %221 = vmatmul.mubr.f32.gmra.mrb[0].mxu0 %v79
  %v222 = vpop.f32.mrb[0].mxu0
  %v223 = vadd.f32 0.0, %v222
  %v224 = vpop.f32.mrb[0].mxu0
  %225 = vmatprep.mubr.f32.mxu0 0.0
  %226 = vmatmul.mubr.f32.gmra.mrb[0].mxu0 %v82
  %v227 = vpop.f32.mrb[0].mxu0
  %v228 = vadd.f32 0.0, %v227
  %v229 = vpop.f32.mrb[0].mxu0
  %230 = vmatprep.mubr.f32.mxu0 0.0
  %231 = vmatmul.mubr.f32.gmra.mrb[0].mxu0 %v85
  %v232 = vpop.f32.mrb[0].mxu0
  %v233 = vadd.f32 0.0, %v232
  %v234 = vpop.f32.mrb[0].mxu0
  %235 = vdwg.mxu0
  %v236 = vld [vmem:[%s2] sm:$0x1]
  %v238 = vlaneseq
  %v239 = vshrl.u32 %v238, 7
  %v240 = vsub.s32 0, %v239
  %v241 = vrot.slane %v236, %v240
  %v243 = vmul.f32 %v158, %v241
  %v244 = vmul.f32 %v163, %v241
  %v245 = vmul.f32 %v168, %v241
  %v246 = vmul.f32 %v173, %v241
  %v247 = vmul.f32 %v178, %v241
  %v248 = vmul.f32 %v183, %v241
  %v249 = vmul.f32 %v188, %v241
  %v250 = vmul.f32 %v193, %v241
  %v251 = vmul.f32 %v198, %v241
  %v252 = vmul.f32 %v203, %v241
  %v253 = vmul.f32 %v208, %v241
  %v254 = vmul.f32 %v213, %v241
  %v255 = vmul.f32 %v218, %v241
  %v256 = vmul.f32 %v223, %v241
  %v257 = vmul.f32 %v228, %v241
  %v258 = vmul.f32 %v233, %v241
  %v259 = vld [vmem:[%s3] sm:$0x1]
  %v261 = vlaneseq
  %v262 = vshrl.u32 %v261, 7
  %v263 = vsub.s32 0, %v262
  %v264 = vrot.slane %v259, %v263
  %v266 = vadd.f32 %v243, %v264
  %v267 = vadd.f32 %v244, %v264
  %v268 = vadd.f32 %v245, %v264
  %v269 = vadd.f32 %v246, %v264
  %v270 = vadd.f32 %v247, %v264
  %v271 = vadd.f32 %v248, %v264
  %v272 = vadd.f32 %v249, %v264
  %v273 = vadd.f32 %v250, %v264
  %v274 = vadd.f32 %v251, %v264
  %v275 = vadd.f32 %v252, %v264
  %v276 = vadd.f32 %v253, %v264
  %v277 = vadd.f32 %v254, %v264
  %v278 = vadd.f32 %v255, %v264
  %v279 = vadd.f32 %v256, %v264
  %v280 = vadd.f32 %v257, %v264
  %v281 = vadd.f32 %v258, %v264
  %vm282 = vcmp.ge.f32.partialorder %v266, 0.0
  %vm283 = vcmp.ge.f32.partialorder %v267, 0.0
  %vm284 = vcmp.ge.f32.partialorder %v268, 0.0
  %vm285 = vcmp.ge.f32.partialorder %v269, 0.0
  %vm286 = vcmp.ge.f32.partialorder %v270, 0.0
  %vm287 = vcmp.ge.f32.partialorder %v271, 0.0
  %vm288 = vcmp.ge.f32.partialorder %v272, 0.0
  %vm289 = vcmp.ge.f32.partialorder %v273, 0.0
  %vm290 = vcmp.ge.f32.partialorder %v274, 0.0
  %vm291 = vcmp.ge.f32.partialorder %v275, 0.0
  %vm292 = vcmp.ge.f32.partialorder %v276, 0.0
  %vm293 = vcmp.ge.f32.partialorder %v277, 0.0
  %vm294 = vcmp.ge.f32.partialorder %v278, 0.0
  %vm295 = vcmp.ge.f32.partialorder %v279, 0.0
  %vm296 = vcmp.ge.f32.partialorder %v280, 0.0
  %vm297 = vcmp.ge.f32.partialorder %v281, 0.0
  %v298 = vmul.f32 %v266, 0.2
  %v299 = vmul.f32 %v267, 0.2
  %v300 = vmul.f32 %v268, 0.2
  %v301 = vmul.f32 %v269, 0.2
  %v302 = vmul.f32 %v270, 0.2
  %v303 = vmul.f32 %v271, 0.2
  %v304 = vmul.f32 %v272, 0.2
  %v305 = vmul.f32 %v273, 0.2
  %v306 = vmul.f32 %v274, 0.2
  %v307 = vmul.f32 %v275, 0.2
  %v308 = vmul.f32 %v276, 0.2
  %v309 = vmul.f32 %v277, 0.2
  %v310 = vmul.f32 %v278, 0.2
  %v311 = vmul.f32 %v279, 0.2
  %v312 = vmul.f32 %v280, 0.2
  %v313 = vmul.f32 %v281, 0.2
  %v314 = vsel %vm282, %v266, %v298
  %v315 = vsel %vm283, %v267, %v299
  %v316 = vsel %vm284, %v268, %v300
  %v317 = vsel %vm285, %v269, %v301
  %v318 = vsel %vm286, %v270, %v302
  %v319 = vsel %vm287, %v271, %v303
  %v320 = vsel %vm288, %v272, %v304
  %v321 = vsel %vm289, %v273, %v305
  %v322 = vsel %vm290, %v274, %v306
  %v323 = vsel %vm291, %v275, %v307
  %v324 = vsel %vm292, %v276, %v308
  %v325 = vsel %vm293, %v277, %v309
  %v326 = vsel %vm294, %v278, %v310
  %v327 = vsel %vm295, %v279, %v311
  %v328 = vsel %vm296, %v280, %v312
  %v329 = vsel %vm297, %v281, %v313
  %vm330 = vcmask 64512
  %331 = vst.msk [vmem:[%s4] sm:$0xff] %vm330, %v314
  %332 = vst.msk [vmem:[%s4 + $0x8] sm:$0xff] %vm330, %v315
  %333 = vst.msk [vmem:[%s4 + $0x10] sm:$0xff] %vm330, %v316
  %334 = vst.msk [vmem:[%s4 + $0x18] sm:$0xff] %vm330, %v317
  %335 = vst.msk [vmem:[%s4 + $0x20] sm:$0xff] %vm330, %v318
  %336 = vst.msk [vmem:[%s4 + $0x28] sm:$0xff] %vm330, %v319
  %337 = vst.msk [vmem:[%s4 + $0x30] sm:$0xff] %vm330, %v320
  %338 = vst.msk [vmem:[%s4 + $0x38] sm:$0xff] %vm330, %v321
  %339 = vst.msk [vmem:[%s4 + $0x40] sm:$0xff] %vm330, %v322
  %340 = vst.msk [vmem:[%s4 + $0x48] sm:$0xff] %vm330, %v323
  %341 = vst.msk [vmem:[%s4 + $0x50] sm:$0xff] %vm330, %v324
  %342 = vst.msk [vmem:[%s4 + $0x58] sm:$0xff] %vm330, %v325
  %343 = vst.msk [vmem:[%s4 + $0x60] sm:$0xff] %vm330, %v326
  %344 = vst.msk [vmem:[%s4 + $0x68] sm:$0xff] %vm330, %v327
  %345 = vst.msk [vmem:[%s4 + $0x70] sm:$0xff] %vm330, %v328
  %346 = vst.msk [vmem:[%s4 + $0x78] sm:$0xff] %vm330, %v329
  // Predicated region
  $region18: #{blocks_forward.3} parent=0 // pred_check
    _
  $region19: #{blocks_forward.3} parent=0 // pred_check_branch
    %348 = sbr.rel (0) target = $region21
  $region20: #{blocks_forward.3} parent=0 // pred_region
    _
  $region21: #{blocks_forward.3} parent=0 // pred_fallthru
    _
  // Predicated region
  $region22: #{blocks_forward.3} parent=0 // pred_check
    _
  $region23: #{blocks_forward.3} parent=0 // pred_check_branch
    %350 = sbr.rel (0) target = $region25
  $region24: #{blocks_forward.3} parent=0 // pred_region
    _
  $region25: #{blocks_forward.3} parent=0 // pred_fallthru
    _

// kernel: blocks_forward.2
$region0: #{blocks_forward.2}
  #allocation0 [shape = 'u32[]', space=smem, size = 0x4, offset = 0x4, fixed_abs, tag = 'smem constant byte address 0x4 - core index']
  #allocation1 [shape = 'u32[144,128]{1,0:T(1,128)}', space=vmem, size = 0x12000, scoped, tag = 'internal scratch']
  %s0 = inlined_call_operand.vmem [shape: f32[128,36], index: 0, kind: input, shape index: {}]
  %s1 = inlined_call_operand.vmem [shape: f32[36,128], index: 1, kind: input, shape index: {}]
  %s2 = inlined_call_operand.vmem [shape: f32[1,8,128], index: 2, kind: output, shape index: {}]
  %s3 = sld [smem:[#allocation0]]
  $region18: #{blocks_forward.2} parent=0
    _
  %s5 = ssub.s32 1, %s3
  %s6 = scalar_select 0, %s5, %s3
  // Predicated region
  $region2: #{blocks_forward.2} parent=0 // pred_check
    _
  $region3: #{blocks_forward.2} parent=0 // pred_check_branch
    %8 = sbr.rel (0) target = $region5
  $region4: #{blocks_forward.2} parent=0 // pred_region
    _
  $region5: #{blocks_forward.2} parent=0 // pred_fallthru
    _
  // Predicated region
  $region6: #{blocks_forward.2} parent=0 // pred_check
    _
  $region7: #{blocks_forward.2} parent=0 // pred_check_branch
    %10 = sbr.rel (0) target = $region9
  $region8: #{blocks_forward.2} parent=0 // pred_region
    _
  $region9: #{blocks_forward.2} parent=0 // pred_fallthru
    _
  %v11 = vld [vmem:[%s0] sm:$0xff]
  %v12 = vld [vmem:[%s0 + $0x8] sm:$0xff]
  %v13 = vld [vmem:[%s0 + $0x10] sm:$0xff]
  %v14 = vld [vmem:[%s0 + $0x18] sm:$0xff]
  %v15 = vld [vmem:[%s0 + $0x20] sm:$0xff]
  %v16 = vld [vmem:[%s0 + $0x28] sm:$0xff]
  %v17 = vld [vmem:[%s0 + $0x30] sm:$0xff]
  %v18 = vld [vmem:[%s0 + $0x38] sm:$0xff]
  %v19 = vld [vmem:[%s0 + $0x40] sm:$0xff]
  %v20 = vld [vmem:[%s0 + $0x48] sm:$0xff]
  %v21 = vld [vmem:[%s0 + $0x50] sm:$0xff]
  %v22 = vld [vmem:[%s0 + $0x58] sm:$0xff]
  %v23 = vld [vmem:[%s0 + $0x60] sm:$0xff]
  %v24 = vld [vmem:[%s0 + $0x68] sm:$0xff]
  %v25 = vld [vmem:[%s0 + $0x70] sm:$0xff]
  %v26 = vld [vmem:[%s0 + $0x78] sm:$0xff]
  %v27 = vld [vmem:[%s1] sm:$0xff]
  %v28 = vld [vmem:[%s1 + $0x8] sm:$0xff]
  %v29 = vld [vmem:[%s1 + $0x10] sm:$0xff]
  %v30 = vld [vmem:[%s1 + $0x18] sm:$0xff]
  %v31 = vld [vmem:[%s1 + $0x20] sm:$0xf]
  %vm32 = vcmask 293888
  %v34 = vsel %vm32, %v11, 0
  %v37 = vsel %vm32, %v12, 0
  %v40 = vsel %vm32, %v13, 0
  %v43 = vsel %vm32, %v14, 0
  %v46 = vsel %vm32, %v15, 0
  %v49 = vsel %vm32, %v16, 0
  %v52 = vsel %vm32, %v17, 0
  %v55 = vsel %vm32, %v18, 0
  %v58 = vsel %vm32, %v19, 0
  %v61 = vsel %vm32, %v20, 0
  %v64 = vsel %vm32, %v21, 0
  %v67 = vsel %vm32, %v22, 0
  %v70 = vsel %vm32, %v23, 0
  %v73 = vsel %vm32, %v24, 0
  %v76 = vsel %vm32, %v25, 0
  %v79 = vsel %vm32, %v26, 0
  %vm81 = vcmask 1043456
  %v83 = vsel %vm81, %v31, 0
  %85 = vmatprep.subr.mxu0 0.0
  %86 = vmatpush1.msra.mxu0 %v27
  %87 = vmatprep.subr.mxu0 0.0
  %88 = vmatpush1.msra.mxu0 %v28
  %89 = vmatprep.subr.mxu0 0.0
  %90 = vmatpush1.msra.mxu0 %v29
  %91 = vmatprep.subr.mxu0 0.0
  %92 = vmatpush1.msra.mxu0 %v30
  %93 = vmatprep.subr.mxu0 0.0
  %94 = vmatpush1.msra.mxu0 %v83
  %95 = vmatprep.subr.mxu0 0.0
  %96 = vmatpush1.msra.mxu0 0.0
  %97 = vmatprep.subr.mxu0 0.0
  %98 = vmatpush1.msra.mxu0 0.0
  %99 = vmatprep.subr.mxu0 0.0
  %100 = vmatpush1.msra.mxu0 0.0
  %101 = vmatprep.subr.mxu0 0.0
  %102 = vmatpush1.msra.mxu0 0.0
  %103 = vmatprep.subr.mxu0 0.0
  %104 = vmatpush1.msra.mxu0 0.0
  %105 = vmatprep.subr.mxu0 0.0
  %106 = vmatpush1.msra.mxu0 0.0
  %107 = vmatprep.subr.mxu0 0.0
  %108 = vmatpush1.msra.mxu0 0.0
  %109 = vmatprep.subr.mxu0 0.0
  %110 = vmatpush1.msra.mxu0 0.0
  %111 = vmatprep.subr.mxu0 0.0
  %112 = vmatpush1.msra.mxu0 0.0
  %113 = vmatprep.subr.mxu0 0.0
  %114 = vmatpush1.msra.mxu0 0.0
  %115 = vmatprep.subr.mxu0 0.0
  %116 = vmatpush1.msra.mxu0 0.0
  %117 = vmatprep.subr.mxu0 0.0
  %118 = vmatpush1.msra.mxu0 0.0
  %119 = vmatprep.subr.mxu0 0.0
  %120 = vmatpush1.msra.mxu0 0.0
  %121 = vmatprep.subr.mxu0 0.0
  %122 = vmatpush1.msra.mxu0 0.0
  %123 = vmatprep.subr.mxu0 0.0
  %124 = vmatpush1.msra.mxu0 0.0
  %125 = vmatprep.subr.mxu0 0.0
  %126 = vmatpush1.msra.mxu0 0.0
  %127 = vmatprep.subr.mxu0 0.0
  %128 = vmatpush1.msra.mxu0 0.0
  %129 = vmatprep.subr.mxu0 0.0
  %130 = vmatpush1.msra.mxu0 0.0
  %131 = vmatprep.subr.mxu0 0.0
  %132 = vmatpush1.msra.mxu0 0.0
  %133 = vmatprep.subr.mxu0 0.0
  %134 = vmatpush1.msra.mxu0 0.0
  %135 = vmatprep.subr.mxu0 0.0
  %136 = vmatpush1.msra.mxu0 0.0
  %137 = vmatprep.subr.mxu0 0.0
  %138 = vmatpush1.msra.mxu0 0.0
  %139 = vmatprep.subr.mxu0 0.0
  %140 = vmatpush1.msra.mxu0 0.0
  %141 = vmatprep.subr.mxu0 0.0
  %142 = vmatpush1.msra.mxu0 0.0
  %143 = vmatprep.subr.mxu0 0.0
  %144 = vmatpush1.msra.mxu0 0.0
  %145 = vmatprep.subr.mxu0 0.0
  %146 = vmatpush1.msra.mxu0 0.0
  %147 = vmatprep.subr.mxu0 0.0
  %148 = vmatpush1.msra.mxu0 0.0
  %149 = vmatprep.mubr.f32.mxu0 0.0
  %150 = vmatmul.mubr.f32.gmra.mrb[0].mxu0 %v34
  %v151 = vpop.f32.mrb[0].mxu0
  %v152 = vadd.f32 0.0, %v151
  %v153 = vpop.f32.mrb[0].mxu0
  %154 = vmatprep.mubr.f32.mxu0 0.0
  %155 = vmatmul.mubr.f32.gmra.mrb[0].mxu0 %v37
  %v156 = vpop.f32.mrb[0].mxu0
  %v157 = vadd.f32 0.0, %v156
  %v158 = vpop.f32.mrb[0].mxu0
  %159 = vmatprep.mubr.f32.mxu0 0.0
  %160 = vmatmul.mubr.f32.gmra.mrb[0].mxu0 %v40
  %v161 = vpop.f32.mrb[0].mxu0
  %v162 = vadd.f32 0.0, %v161
  %v163 = vpop.f32.mrb[0].mxu0
  %164 = vmatprep.mubr.f32.mxu0 0.0
  %165 = vmatmul.mubr.f32.gmra.mrb[0].mxu0 %v43
  %v166 = vpop.f32.mrb[0].mxu0
  %v167 = vadd.f32 0.0, %v166
  %v168 = vpop.f32.mrb[0].mxu0
  %169 = vmatprep.mubr.f32.mxu0 0.0
  %170 = vmatmul.mubr.f32.gmra.mrb[0].mxu0 %v46
  %v171 = vpop.f32.mrb[0].mxu0
  %v172 = vadd.f32 0.0, %v171
  %v173 = vpop.f32.mrb[0].mxu0
  %174 = vmatprep.mubr.f32.mxu0 0.0
  %175 = vmatmul.mubr.f32.gmra.mrb[0].mxu0 %v49
  %v176 = vpop.f32.mrb[0].mxu0
  %v177 = vadd.f32 0.0, %v176
  %v178 = vpop.f32.mrb[0].mxu0
  %179 = vmatprep.mubr.f32.mxu0 0.0
  %180 = vmatmul.mubr.f32.gmra.mrb[0].mxu0 %v52
  %v181 = vpop.f32.mrb[0].mxu0
  %v182 = vadd.f32 0.0, %v181
  %v183 = vpop.f32.mrb[0].mxu0
  %184 = vmatprep.mubr.f32.mxu0 0.0
  %185 = vmatmul.mubr.f32.gmra.mrb[0].mxu0 %v55
  %v186 = vpop.f32.mrb[0].mxu0
  %v187 = vadd.f32 0.0, %v186
  %v188 = vpop.f32.mrb[0].mxu0
  %189 = vmatprep.mubr.f32.mxu0 0.0
  %190 = vmatmul.mubr.f32.gmra.mrb[0].mxu0 %v58
  %v191 = vpop.f32.mrb[0].mxu0
  %v192 = vadd.f32 0.0, %v191
  %v193 = vpop.f32.mrb[0].mxu0
  %194 = vmatprep.mubr.f32.mxu0 0.0
  %195 = vmatmul.mubr.f32.gmra.mrb[0].mxu0 %v61
  %v196 = vpop.f32.mrb[0].mxu0
  %v197 = vadd.f32 0.0, %v196
  %v198 = vpop.f32.mrb[0].mxu0
  %199 = vmatprep.mubr.f32.mxu0 0.0
  %200 = vmatmul.mubr.f32.gmra.mrb[0].mxu0 %v64
  %v201 = vpop.f32.mrb[0].mxu0
  %v202 = vadd.f32 0.0, %v201
  %v203 = vpop.f32.mrb[0].mxu0
  %204 = vmatprep.mubr.f32.mxu0 0.0
  %205 = vmatmul.mubr.f32.gmra.mrb[0].mxu0 %v67
  %v206 = vpop.f32.mrb[0].mxu0
  %v207 = vadd.f32 0.0, %v206
  %v208 = vpop.f32.mrb[0].mxu0
  %209 = vmatprep.mubr.f32.mxu0 0.0
  %210 = vmatmul.mubr.f32.gmra.mrb[0].mxu0 %v70
  %v211 = vpop.f32.mrb[0].mxu0
  %v212 = vadd.f32 0.0, %v211
  %v213 = vpop.f32.mrb[0].mxu0
  %214 = vmatprep.mubr.f32.mxu0 0.0
  %215 = vmatmul.mubr.f32.gmra.mrb[0].mxu0 %v73
  %v216 = vpop.f32.mrb[0].mxu0
  %v217 = vadd.f32 0.0, %v216
  %v218 = vpop.f32.mrb[0].mxu0
  %219 = vmatprep.mubr.f32.mxu0 0.0
  %220 = vmatmul.mubr.f32.gmra.mrb[0].mxu0 %v76
  %v221 = vpop.f32.mrb[0].mxu0
  %v222 = vadd.f32 0.0, %v221
  %v223 = vpop.f32.mrb[0].mxu0
  %224 = vmatprep.mubr.f32.mxu0 0.0
  %225 = vmatmul.mubr.f32.gmra.mrb[0].mxu0 %v79
  %v226 = vpop.f32.mrb[0].mxu0
  %v227 = vadd.f32 0.0, %v226
  %v228 = vpop.f32.mrb[0].mxu0
  %229 = vdwg.mxu0
  %v230 = vlaneseq
  %v231 = vshrl.u32 %v230, 7
  %v232 = vadd.s32 %v231, 8
  %v233 = vadd.s32 %v231, 16
  %v234 = vadd.s32 %v231, 24
  %v235 = vadd.s32 %v231, 32
  %v236 = vadd.s32 %v231, 40
  %v237 = vadd.s32 %v231, 48
  %v238 = vadd.s32 %v231, 56
  %v239 = vadd.s32 %v231, 64
  %v240 = vadd.s32 %v231, 72
  %v241 = vadd.s32 %v231, 80
  %v242 = vadd.s32 %v231, 88
  %v243 = vadd.s32 %v231, 96
  %v244 = vadd.s32 %v231, 104
  %v245 = vadd.s32 %v231, 112
  %v246 = vadd.s32 %v231, 120
  %s247 = smul.u32 0, 128
  %s248 = ssub.s32 128, %s247
  %v249 = vstv %s248
  %vm250 = vcmp.lt.s32.totalorder %v231, %v249
  %vm251 = vcmp.lt.s32.totalorder %v232, %v249
  %vm252 = vcmp.lt.s32.totalorder %v233, %v249
  %vm253 = vcmp.lt.s32.totalorder %v234, %v249
  %vm254 = vcmp.lt.s32.totalorder %v235, %v249
  %vm255 = vcmp.lt.s32.totalorder %v236, %v249
  %vm256 = vcmp.lt.s32.totalorder %v237, %v249
  %vm257 = vcmp.lt.s32.totalorder %v238, %v249
  %vm258 = vcmp.lt.s32.totalorder %v239, %v249
  %vm259 = vcmp.lt.s32.totalorder %v240, %v249
  %vm260 = vcmp.lt.s32.totalorder %v241, %v249
  %vm261 = vcmp.lt.s32.totalorder %v242, %v249
  %vm262 = vcmp.lt.s32.totalorder %v243, %v249
  %vm263 = vcmp.lt.s32.totalorder %v244, %v249
  %vm264 = vcmp.lt.s32.totalorder %v245, %v249
  %vm265 = vcmp.lt.s32.totalorder %v246, %v249
  %p266 = scmp.lt.s32.totalorder %s248, 128
  %s267 = scalar_select %p266, %s248, 128
  %s268 = scvt.s32.f32 %s267
  %v269 = vsel %vm250, 1, 0
  %v270 = vsel %vm251, 1, 0
  %v271 = vsel %vm252, 1, 0
  %v272 = vsel %vm253, 1, 0
  %v273 = vsel %vm254, 1, 0
  %v274 = vsel %vm255, 1, 0
  %v275 = vsel %vm256, 1, 0
  %v276 = vsel %vm257, 1, 0
  %v277 = vsel %vm258, 1, 0
  %v278 = vsel %vm259, 1, 0
  %v279 = vsel %vm260, 1, 0
  %v280 = vsel %vm261, 1, 0
  %v281 = vsel %vm262, 1, 0
  %v282 = vsel %vm263, 1, 0
  %v283 = vsel %vm264, 1, 0
  %v284 = vsel %vm265, 1, 0
  %vm285 = vcmp.eq.s32.totalorder %v269, 1
  %vm286 = vcmp.eq.s32.totalorder %v270, 1
  %vm287 = vcmp.eq.s32.totalorder %v271, 1
  %vm288 = vcmp.eq.s32.totalorder %v272, 1
  %vm289 = vcmp.eq.s32.totalorder %v273, 1
  %vm290 = vcmp.eq.s32.totalorder %v274, 1
  %vm291 = vcmp.eq.s32.totalorder %v275, 1
  %vm292 = vcmp.eq.s32.totalorder %v276, 1
  %vm293 = vcmp.eq.s32.totalorder %v277, 1
  %vm294 = vcmp.eq.s32.totalorder %v278, 1
  %vm295 = vcmp.eq.s32.totalorder %v279, 1
  %vm296 = vcmp.eq.s32.totalorder %v280, 1
  %vm297 = vcmp.eq.s32.totalorder %v281, 1
  %vm298 = vcmp.eq.s32.totalorder %v282, 1
  %vm299 = vcmp.eq.s32.totalorder %v283, 1
  %vm300 = vcmp.eq.s32.totalorder %v284, 1
  %v301 = vsel %vm285, %v152, 0.0
  %v302 = vsel %vm286, %v157, 0.0
  %v303 = vsel %vm287, %v162, 0.0
  %v304 = vsel %vm288, %v167, 0.0
  %v305 = vsel %vm289, %v172, 0.0
  %v306 = vsel %vm290, %v177, 0.0
  %v307 = vsel %vm291, %v182, 0.0
  %v308 = vsel %vm292, %v187, 0.0
  %v309 = vsel %vm293, %v192, 0.0
  %v310 = vsel %vm294, %v197, 0.0
  %v311 = vsel %vm295, %v202, 0.0
  %v312 = vsel %vm296, %v207, 0.0
  %v313 = vsel %vm297, %v212, 0.0
  %v314 = vsel %vm298, %v217, 0.0
  %v315 = vsel %vm299, %v222, 0.0
  %v316 = vsel %vm300, %v227, 0.0
  %v317 = vadd.f32 %v301, %v302
  %v318 = vadd.f32 %v317, %v303
  %v319 = vadd.f32 %v318, %v304
  %v320 = vadd.f32 %v319, %v305
  %v321 = vadd.f32 %v320, %v306
  %v322 = vadd.f32 %v321, %v307
  %v323 = vadd.f32 %v322, %v308
  %v324 = vadd.f32 %v323, %v309
  %v325 = vadd.f32 %v324, %v310
  %v326 = vadd.f32 %v325, %v311
  %v327 = vadd.f32 %v326, %v312
  %v328 = vadd.f32 %v327, %v313
  %v329 = vadd.f32 %v328, %v314
  %v330 = vadd.f32 %v329, %v315
  %v331 = vadd.f32 %v330, %v316
  %v332 = vrot.slane %v331, 4
  %v333 = vadd.f32 %v331, %v332
  %v334 = vrot.slane %v333, 2
  %v335 = vadd.f32 %v333, %v334
  %v336 = vrot.slane %v335, 1
  %v337 = vadd.f32 %v335, %v336
  %v338 = vstv %s268
  %v339 = vrcp.pop %v338
  %v340 = vmul.f32 %v337, %v339
  %v341 = vsub.f32 %v152, %v340
  %v342 = vsub.f32 %v157, %v340
  %v343 = vsub.f32 %v162, %v340
  %v344 = vsub.f32 %v167, %v340
  %v345 = vsub.f32 %v172, %v340
  %v346 = vsub.f32 %v177, %v340
  %v347 = vsub.f32 %v182, %v340
  %v348 = vsub.f32 %v187, %v340
  %v349 = vsub.f32 %v192, %v340
  %v350 = vsub.f32 %v197, %v340
  %v351 = vsub.f32 %v202, %v340
  %v352 = vsub.f32 %v207, %v340
  %v353 = vsub.f32 %v212, %v340
  %v354 = vsub.f32 %v217, %v340
  %v355 = vsub.f32 %v222, %v340
  %v356 = vsub.f32 %v227, %v340
  %v357 = vsel %vm285, %v341, 0.0
  %v358 = vsel %vm286, %v342, 0.0
  %v359 = vsel %vm287, %v343, 0.0
  %v360 = vsel %vm288, %v344, 0.0
  %v361 = vsel %vm289, %v345, 0.0
  %v362 = vsel %vm290, %v346, 0.0
  %v363 = vsel %vm291, %v347, 0.0
  %v364 = vsel %vm292, %v348, 0.0
  %v365 = vsel %vm293, %v349, 0.0
  %v366 = vsel %vm294, %v350, 0.0
  %v367 = vsel %vm295, %v351, 0.0
  %v368 = vsel %vm296, %v352, 0.0
  %v369 = vsel %vm297, %v353, 0.0
  %v370 = vsel %vm298, %v354, 0.0
  %v371 = vsel %vm299, %v355, 0.0
  %v372 = vsel %vm300, %v356, 0.0
  %v373 = vmul.f32 %v357, %v357
  %v374 = vmul.f32 %v358, %v358
  %v375 = vmul.f32 %v359, %v359
  %v376 = vmul.f32 %v360, %v360
  %v377 = vmul.f32 %v361, %v361
  %v378 = vmul.f32 %v362, %v362
  %v379 = vmul.f32 %v363, %v363
  %v380 = vmul.f32 %v364, %v364
  %v381 = vmul.f32 %v365, %v365
  %v382 = vmul.f32 %v366, %v366
  %v383 = vmul.f32 %v367, %v367
  %v384 = vmul.f32 %v368, %v368
  %v385 = vmul.f32 %v369, %v369
  %v386 = vmul.f32 %v370, %v370
  %v387 = vmul.f32 %v371, %v371
  %v388 = vmul.f32 %v372, %v372
  %v389 = vadd.f32 %v373, %v374
  %v390 = vadd.f32 %v389, %v375
  %v391 = vadd.f32 %v390, %v376
  %v392 = vadd.f32 %v391, %v377
  %v393 = vadd.f32 %v392, %v378
  %v394 = vadd.f32 %v393, %v379
  %v395 = vadd.f32 %v394, %v380
  %v396 = vadd.f32 %v395, %v381
  %v397 = vadd.f32 %v396, %v382
  %v398 = vadd.f32 %v397, %v383
  %v399 = vadd.f32 %v398, %v384
  %v400 = vadd.f32 %v399, %v385
  %v401 = vadd.f32 %v400, %v386
  %v402 = vadd.f32 %v401, %v387
  %v403 = vadd.f32 %v402, %v388
  %v404 = vrot.slane %v403, 4
  %v405 = vadd.f32 %v403, %v404
  %v406 = vrot.slane %v405, 2
  %v407 = vadd.f32 %v405, %v406
  %v408 = vrot.slane %v407, 1
  %v409 = vadd.f32 %v407, %v408
  %410 = vst [vmem:[%s2] sm:$0x1] %v337
  %411 = vst [vmem:[%s2 + $0x1] sm:$0x1] %v409
  // Predicated region
  $region10: #{blocks_forward.2} parent=0 // pred_check
    _
  $region11: #{blocks_forward.2} parent=0 // pred_check_branch
    %413 = sbr.rel (0) target = $region13
  $region12: #{blocks_forward.2} parent=0 // pred_region
    _
  $region13: #{blocks_forward.2} parent=0 // pred_fallthru
    _
  // Predicated region
  $region14: #{blocks_forward.2} parent=0 // pred_check
    _
  $region15: #{blocks_forward.2} parent=0 // pred_check_branch
    %415 = sbr.rel (0) target = $region17
  $region16: #{blocks_forward.2} parent=0 // pred_region
    _
  $region17: #{blocks_forward.2} parent=0 // pred_fallthru
    _

</llo_original>
